<compile_context>
chip_gen: v7x
topology: tpu7x:2x2x1
jax: 0.10.0
libtpu: 0.0.40
codegen_flags: <defaults>
</compile_context>

<pallas_src>
import jax
import jax.numpy as jnp
from jax.experimental import pallas as pl
from jax.experimental.pallas import tpu as pltpu

ALPHA = 1.0      # cweight
THR = 0.1        # min_dist
COS_EPS = 1e-8   # torch.nn.CosineSimilarity default eps


def fidelity_kernel(grad_ref, x_ref, wt_ref, b_ref, y_ref, loss_ref, xloss_ref):
    # Cast AFTER load: inputs arrive bf16 (half the HBM->VMEM bytes); all
    # elementwise/EUP math stays f32 (required on v5e, harmless on v6e/v7x).
    g = grad_ref[...].astype(jnp.float32)              # [B, D]
    x_native = x_ref[...]                               # [B, D] (bf16 as passed)
    x = x_native.astype(jnp.float32)                    # [B, D]
    w = wt_ref[...]                                      # [NCLS, D] lane-dense
    bias = b_ref[...].astype(jnp.float32)                # [1, NCLS]
    B = g.shape[0]
    inv_b = 1.0 / B

    # --- per-sample grad normalization + masking ---------------------------
    # 1 - (g - gmin)/(gmax - gmin) == (gmax - g) * 1/(gmax - gmin)
    gmax = jnp.max(g, axis=1, keepdims=True)             # [B, 1]
    gmin = jnp.min(g, axis=1, keepdims=True)             # [B, 1]
    # Exact divide (only B values) — matches the PyTorch reference divide;
    # gmax == gmin still yields inf, same hazard as the reference.
    inv_rng = 1.0 / (gmax - gmin)                         # [B, 1]
    x_masked = x * ((gmax - g) * inv_rng)                 # [B, D]

    # --- fused model forward (linear classifier, lane-dense wT) ------------
    # Contract dim 1 of both operands: Mosaic's native transposed-rhs matmul,
    # bf16 x bf16 -> f32 accumulation (single-pass MXU on v5e/v6e/v7x).
    def model(inp_native_dtype):
        return jax.lax.dot_general(
            inp_native_dtype, w,
            dimension_numbers=(((1,), (1,)), ((), ())),
            preferred_element_type=jnp.float32,
        ) + bias                                          # [B, NCLS] f32

    out = model(x_native.astype(w.dtype))                 # outputs  = model(x)
    logits0 = model(x_masked.astype(w.dtype))              # outputs0 = model(x_masked)

    # --- |cosine similarity| along classes, hinge against threshold --------
    # torch: w12 / sqrt(clamp(w1*w2, eps^2))  ->  num * rsqrt(max(n1*n2, eps^2))
    num = jnp.sum(out * logits0, axis=1, keepdims=True)            # [B, 1]
    n1s = jnp.sum(out * out, axis=1, keepdims=True)                # [B, 1]
    n2s = jnp.sum(logits0 * logits0, axis=1, keepdims=True)        # [B, 1]
    cos = num * jax.lax.rsqrt(jnp.maximum(n1s * n2s, COS_EPS * COS_EPS))
    dist = jnp.abs(cos)                                             # [B, 1]
    xloss = jnp.maximum(
        0.0, jnp.sum(dist, axis=0, keepdims=True) * inv_b - THR)    # [1, 1]

    # --- cross entropy: log_softmax(outputs, dim=1) gathered at y ----------
    m = jnp.max(out, axis=1, keepdims=True)
    lse = jnp.log(jnp.sum(jnp.exp(out - m), axis=1, keepdims=True)) + m
    logp = out - lse                                                # [B, NCLS]

    # Single broadcast compare against the [B,1] label column (no Python loop).
    # TODO(synk): no ignore_index handling (PyTorch CrossEntropyLoss default -100).
    cls_ids = jax.lax.broadcasted_iota(jnp.int32, out.shape, 1)     # [B, NCLS]
    y_col = y_ref[...]                                              # [B, 1] int32
    picked = jnp.where(cls_ids == y_col, logp, 0.0)                 # [B, NCLS]
    celoss = -jnp.sum(jnp.sum(picked, axis=1, keepdims=True),
                      axis=0, keepdims=True) * inv_b                # [1, 1]

    # --- outputs: two (1,1) full-block stores (no merge ops) ----------------
    loss_ref[...] = celoss + ALPHA * xloss
    xloss_ref[...] = xloss


def fidelity_constraint(grad, x, wt, b, y):
    """Returns (loss, xloss) exactly as the PyTorch forward (xloss was the
    value appended to `xl`).  `outputs = model(x)` and `outputs0 =
    model(x_masked)` are both computed inside the kernel from the fused
    linear-classifier weights.

    Args:
      grad: [B, C, H, W]          same shape as x (pass bf16 for best perf)
      x:    [B, C, H, W]          (pass bf16 for best perf)
      wt:   [NCLS, D=C*H*W]       lane-dense transposed classifier weight (bf16)
      b:    [NCLS]                f32 bias
      y:    [B] int labels
    """
    B = x.shape[0]
    D = int(x.size) // B
    NCLS = wt.shape[0]
    # Row-major reshapes only — no wrapper-side astype; dtype conversion for
    # VPU math / MXU feed happens in-kernel, so bf16 inputs DMA as bf16.
    grad2 = grad.reshape(B, D)
    x2 = x.reshape(B, D)
    b2 = b.reshape(1, -1)
    y_col = y.reshape(B, 1).astype(jnp.int32)

    vmem = pl.BlockSpec(memory_space=pltpu.MemorySpace.VMEM)

    bytes_in = (grad2.size * grad2.dtype.itemsize
                + x2.size * x2.dtype.itemsize
                + wt.size * wt.dtype.itemsize
                + b2.size * b2.dtype.itemsize
                + y_col.size * 4)
    cost = pl.CostEstimate(
        flops=2 * (2 * B * D * NCLS) + 8 * B * D + 12 * B * NCLS,
        transcendentals=B * NCLS + 3 * B,     # exp(lse) + rsqrt/divide
        bytes_accessed=bytes_in + 8,
    )

    loss, xloss = pl.pallas_call(
        fidelity_kernel,
        out_shape=(jax.ShapeDtypeStruct((1, 1), jnp.float32),
                   jax.ShapeDtypeStruct((1, 1), jnp.float32)),
        in_specs=[vmem, vmem, vmem, vmem, vmem],
        out_specs=(vmem, vmem),
        cost_estimate=cost,
    )(grad2, x2, wt, b2, y_col)
    return loss[0, 0], xloss[0, 0]


if __name__ == "__main__":
    key = jax.random.PRNGKey(0)
    B, C_in, H, W_sp = 2, 4, 16, 16        # x: [2, 4, 16, 16] NCHW
    n_classes = 16
    D = C_in * H * W_sp                    # 1024 (multiple of 128 -> lane-dense)

    k1, k2, k3, k4 = jax.random.split(key, 4)
    # bf16 image-like tensors and bf16 lane-dense transposed weight: halves the
    # HBM->VMEM DMA bytes (biggest relative win on bandwidth-poor v5e) and
    # feeds the MXU its native single-pass dtype.
    x = jax.random.normal(k1, (B, C_in, H, W_sp), jnp.float32).astype(jnp.bfloat16)
    grad = jax.random.normal(k2, (B, C_in, H, W_sp), jnp.float32).astype(jnp.bfloat16)
    y = jax.random.randint(k3, (B,), 0, n_classes)

    # Deterministic synthetic "model": linear classifier on flattened NCHW,
    # stored transposed / lane-dense as wT:[NCLS, D], bf16.
    wt = (0.02 * jax.random.normal(k4, (n_classes, D), jnp.float32)).astype(jnp.bfloat16)
    b = jnp.zeros((n_classes,), jnp.float32)

    loss, xloss = fidelity_constraint(grad, x, wt, b, y)
    jax.block_until_ready(loss)
    jax.block_until_ready(xloss)
    print("KERNEL_OK")
</pallas_src>

<mosaic_0001>
module attributes {stable_mosaic.version = 11 : i64} {
  func.func @fidelity_kernel(%arg0: memref<2x1024xbf16, #tpu.memory_space<vmem>>, %arg1: memref<2x1024xbf16, #tpu.memory_space<vmem>>, %arg2: memref<16x1024xbf16, #tpu.memory_space<vmem>>, %arg3: memref<1x16xf32, #tpu.memory_space<vmem>>, %arg4: memref<2x1xi32, #tpu.memory_space<vmem>>, %arg5: memref<1x1xf32, #tpu.memory_space<vmem>>, %arg6: memref<1x1xf32, #tpu.memory_space<vmem>>) attributes {dimension_semantics = [], scalar_prefetch = 0 : i64, scratch_operands = 0 : i64, tpu.core_type = #tpu.core_type<tc>} {
    %c0 = arith.constant 0 : index
    %c0_0 = arith.constant 0 : index
    %0 = vector.load %arg0[%c0, %c0_0] : memref<2x1024xbf16, #tpu.memory_space<vmem>>, vector<2x1024xbf16>
    %1 = arith.extf %0 : vector<2x1024xbf16> to vector<2x1024xf32>
    %c0_1 = arith.constant 0 : index
    %c0_2 = arith.constant 0 : index
    %2 = vector.load %arg1[%c0_1, %c0_2] : memref<2x1024xbf16, #tpu.memory_space<vmem>>, vector<2x1024xbf16>
    %3 = arith.extf %2 : vector<2x1024xbf16> to vector<2x1024xf32>
    %c0_3 = arith.constant 0 : index
    %c0_4 = arith.constant 0 : index
    %4 = vector.load %arg2[%c0_3, %c0_4] : memref<16x1024xbf16, #tpu.memory_space<vmem>>, vector<16x1024xbf16>
    %c0_5 = arith.constant 0 : index
    %c0_6 = arith.constant 0 : index
    %5 = vector.load %arg3[%c0_5, %c0_6] : memref<1x16xf32, #tpu.memory_space<vmem>>, vector<1x16xf32>
    %cst = arith.constant dense<0xFF800000> : vector<2xf32>
    %6 = vector.multi_reduction <maximumf>, %1, %cst [1] : vector<2x1024xf32> to vector<2xf32>
    %7 = vector.shape_cast %6 : vector<2xf32> to vector<2x1xf32>
    %cst_7 = arith.constant dense<0x7F800000> : vector<2xf32>
    %8 = vector.multi_reduction <minimumf>, %1, %cst_7 [1] : vector<2x1024xf32> to vector<2xf32>
    %9 = vector.shape_cast %8 : vector<2xf32> to vector<2x1xf32>
    %10 = arith.subf %7, %9 : vector<2x1xf32>
    %cst_8 = arith.constant 1.000000e+00 : f32
    %11 = vector.broadcast %cst_8 : f32 to vector<2x1xf32>
    %12 = arith.divf %11, %10 : vector<2x1xf32>
    %13 = vector.broadcast %7 : vector<2x1xf32> to vector<2x1024xf32>
    %14 = arith.subf %13, %1 : vector<2x1024xf32>
    %15 = vector.broadcast %12 : vector<2x1xf32> to vector<2x1024xf32>
    %16 = arith.mulf %14, %15 : vector<2x1024xf32>
    %17 = arith.mulf %3, %16 : vector<2x1024xf32>
    %cst_9 = arith.constant dense<0.000000e+00> : vector<2x16xf32>
    %18 = tpu.matmul %2, %4, %cst_9 {dimension_numbers = #tpu.dot_dimension_numbers<[1], [1], [0], [0], [0, 0, 1, 0], [], []>} : vector<2x1024xbf16>, vector<16x1024xbf16>, vector<2x16xf32> -> vector<2x16xf32>
    %19 = vector.broadcast %5 : vector<1x16xf32> to vector<2x16xf32>
    %20 = arith.addf %18, %19 : vector<2x16xf32>
    %21 = arith.truncf %17 : vector<2x1024xf32> to vector<2x1024xbf16>
    %cst_10 = arith.constant dense<0.000000e+00> : vector<2x16xf32>
    %22 = tpu.matmul %21, %4, %cst_10 {dimension_numbers = #tpu.dot_dimension_numbers<[1], [1], [0], [0], [0, 0, 1, 0], [], []>} : vector<2x1024xbf16>, vector<16x1024xbf16>, vector<2x16xf32> -> vector<2x16xf32>
    %23 = vector.broadcast %5 : vector<1x16xf32> to vector<2x16xf32>
    %24 = arith.addf %22, %23 : vector<2x16xf32>
    %25 = arith.mulf %20, %24 : vector<2x16xf32>
    %cst_11 = arith.constant dense<0.000000e+00> : vector<2xf32>
    %26 = vector.multi_reduction <add>, %25, %cst_11 [1] : vector<2x16xf32> to vector<2xf32>
    %27 = vector.shape_cast %26 : vector<2xf32> to vector<2x1xf32>
    %28 = arith.mulf %20, %20 : vector<2x16xf32>
    %cst_12 = arith.constant dense<0.000000e+00> : vector<2xf32>
    %29 = vector.multi_reduction <add>, %28, %cst_12 [1] : vector<2x16xf32> to vector<2xf32>
    %30 = vector.shape_cast %29 : vector<2xf32> to vector<2x1xf32>
    %31 = arith.mulf %24, %24 : vector<2x16xf32>
    %cst_13 = arith.constant dense<0.000000e+00> : vector<2xf32>
    %32 = vector.multi_reduction <add>, %31, %cst_13 [1] : vector<2x16xf32> to vector<2xf32>
    %33 = vector.shape_cast %32 : vector<2xf32> to vector<2x1xf32>
    %34 = arith.mulf %30, %33 : vector<2x1xf32>
    %cst_14 = arith.constant 1.000000e-16 : f32
    %35 = vector.broadcast %cst_14 : f32 to vector<2x1xf32>
    %36 = arith.maximumf %34, %35 : vector<2x1xf32>
    %37 = math.rsqrt %36 : vector<2x1xf32>
    %38 = arith.mulf %27, %37 : vector<2x1xf32>
    %39 = math.absf %38 : vector<2x1xf32>
    %cst_15 = arith.constant dense<0.000000e+00> : vector<1xf32>
    %40 = vector.multi_reduction <add>, %39, %cst_15 [0] : vector<2x1xf32> to vector<1xf32>
    %41 = vector.shape_cast %40 : vector<1xf32> to vector<1x1xf32>
    %cst_16 = arith.constant 5.000000e-01 : f32
    %42 = vector.broadcast %cst_16 : f32 to vector<1x1xf32>
    %43 = arith.mulf %41, %42 : vector<1x1xf32>
    %cst_17 = arith.constant 1.000000e-01 : f32
    %44 = vector.broadcast %cst_17 : f32 to vector<1x1xf32>
    %45 = arith.subf %43, %44 : vector<1x1xf32>
    %cst_18 = arith.constant 0.000000e+00 : f32
    %46 = vector.broadcast %cst_18 : f32 to vector<1x1xf32>
    %47 = arith.maximumf %46, %45 : vector<1x1xf32>
    %cst_19 = arith.constant dense<0xFF800000> : vector<2xf32>
    %48 = vector.multi_reduction <maximumf>, %20, %cst_19 [1] : vector<2x16xf32> to vector<2xf32>
    %49 = vector.shape_cast %48 : vector<2xf32> to vector<2x1xf32>
    %50 = vector.broadcast %49 : vector<2x1xf32> to vector<2x16xf32>
    %51 = arith.subf %20, %50 : vector<2x16xf32>
    %52 = math.exp %51 : vector<2x16xf32>
    %cst_20 = arith.constant dense<0.000000e+00> : vector<2xf32>
    %53 = vector.multi_reduction <add>, %52, %cst_20 [1] : vector<2x16xf32> to vector<2xf32>
    %54 = vector.shape_cast %53 : vector<2xf32> to vector<2x1xf32>
    %55 = math.log %54 : vector<2x1xf32>
    %56 = arith.addf %55, %49 : vector<2x1xf32>
    %57 = vector.broadcast %56 : vector<2x1xf32> to vector<2x16xf32>
    %58 = arith.subf %20, %57 : vector<2x16xf32>
    %59 = tpu.iota {dimensions = array<i32: 1>} : vector<2x16xi32>
    %c0_21 = arith.constant 0 : index
    %c0_22 = arith.constant 0 : index
    %60 = vector.load %arg4[%c0_21, %c0_22] : memref<2x1xi32, #tpu.memory_space<vmem>>, vector<2x1xi32>
    %61 = vector.broadcast %60 : vector<2x1xi32> to vector<2x16xi32>
    %62 = arith.cmpi eq, %59, %61 : vector<2x16xi32>
    %cst_23 = arith.constant 0.000000e+00 : f32
    %63 = vector.broadcast %cst_23 : f32 to vector<2x16xf32>
    %64 = arith.select %62, %58, %63 : vector<2x16xi1>, vector<2x16xf32>
    %cst_24 = arith.constant dense<0.000000e+00> : vector<2xf32>
    %65 = vector.multi_reduction <add>, %64, %cst_24 [1] : vector<2x16xf32> to vector<2xf32>
    %66 = vector.shape_cast %65 : vector<2xf32> to vector<2x1xf32>
    %cst_25 = arith.constant dense<0.000000e+00> : vector<1xf32>
    %67 = vector.multi_reduction <add>, %66, %cst_25 [0] : vector<2x1xf32> to vector<1xf32>
    %68 = vector.shape_cast %67 : vector<1xf32> to vector<1x1xf32>
    %cst_26 = arith.constant 0.000000e+00 : f32
    %69 = vector.broadcast %cst_26 : f32 to vector<1x1xf32>
    %70 = arith.subf %69, %68 : vector<1x1xf32>
    %cst_27 = arith.constant 5.000000e-01 : f32
    %71 = vector.broadcast %cst_27 : f32 to vector<1x1xf32>
    %72 = arith.mulf %70, %71 : vector<1x1xf32>
    %cst_28 = arith.constant 1.000000e+00 : f32
    %73 = vector.broadcast %cst_28 : f32 to vector<1x1xf32>
    %74 = arith.mulf %73, %47 : vector<1x1xf32>
    %75 = arith.addf %72, %74 : vector<1x1xf32>
    %c0_29 = arith.constant 0 : index
    %c0_30 = arith.constant 0 : index
    %76 = vector.load %arg5[%c0_29, %c0_30] : memref<1x1xf32, #tpu.memory_space<vmem>>, vector<1x1xf32>
    tpu.vector_store %arg5[%c0_29, %c0_30], %75 {strides = array<i32>} : memref<1x1xf32, #tpu.memory_space<vmem>>, vector<1x1xf32>,
    %c0_31 = arith.constant 0 : index
    %c0_32 = arith.constant 0 : index
    %77 = vector.load %arg6[%c0_31, %c0_32] : memref<1x1xf32, #tpu.memory_space<vmem>>, vector<1x1xf32>
    tpu.vector_store %arg6[%c0_31, %c0_32], %47 {strides = array<i32>} : memref<1x1xf32, #tpu.memory_space<vmem>>, vector<1x1xf32>,
    return
  }
}

</mosaic_0001>

<llo_original>
// kernel: tpu_custom_call.1
$region0: #{tpu_custom_call.1}
  #allocation0 [shape = 'u32[]', space=smem, size = 0x4, offset = 0x4, fixed_abs, tag = 'smem constant byte address 0x4 - core index']
  #allocation1 [shape = 'u32[144,128]{1,0:T(1,128)}', space=vmem, size = 0x12000, scoped, tag = 'internal scratch']
  %s0 = inlined_call_operand.hbm [shape: bf16[2,1024], index: 0, kind: input, shape index: {}]
  %s1 = inlined_call_operand.hbm [shape: bf16[2,1024], index: 1, kind: input, shape index: {}]
  %s2 = inlined_call_operand.hbm [shape: bf16[16,1024], index: 2, kind: input, shape index: {}]
  %s3 = inlined_call_operand.vmem [shape: f32[1,16], index: 3, kind: input, shape index: {}]
  %s4 = inlined_call_operand.vmem [shape: s32[2,1], index: 4, kind: input, shape index: {}]
  %s5 = inlined_call_operand.hbm [shape: f32[1,1], index: 5, kind: output, shape index: {0}]
  %s6 = inlined_call_operand.hbm [shape: f32[1,1], index: 6, kind: output, shape index: {1}]
  %7 = xla_tuple %s5, %s6
  %s8 = sld [smem:[#allocation0]]
  $region50: #{tpu_custom_call.1} parent=0
    _
  %s10 = ssub.s32 1, %s8
  %s11 = scalar_select 0, %s10, %s8
  $region1: #{tpu_custom_call.1} parent=0
    #allocation2 [shape = 'u8[4096]{0}', space=vmem, size = 0x1000, scoped, tag = 'input window, operand 0, single buffered']
    #allocation3 [shape = 's32[1]{0}', space=sflag, size = 0x4, scoped, tag = 'scoped memory for tpu_custom_call.1']
    #allocation4 [shape = 's32[1]{0}', space=sflag, size = 0x4, scoped, tag = 'scoped memory for tpu_custom_call.1']
    #allocation5 [shape = 'u8[4096]{0}', space=vmem, size = 0x1000, scoped, tag = 'input window, operand 1, single buffered']
    #allocation6 [shape = 's32[1]{0}', space=sflag, size = 0x4, scoped, tag = 'scoped memory for tpu_custom_call.1']
    #allocation7 [shape = 'u8[32768]{0}', space=vmem, size = 0x8000, scoped, tag = 'input window, operand 2, single buffered']
    #allocation8 [shape = 'u8[512]{0}', space=vmem, size = 0x400, scoped, tag = 'output window, operand 0, single buffered']
    #allocation9 [shape = 'u8[512]{0}', space=vmem, size = 0x400, scoped, tag = 'output window, operand 1, single buffered']
    #allocation10 [shape = 's32[1]{0}', space=sflag, size = 0x4, scoped, tag = 'scoped memory for tpu_custom_call.1']
    %12 = vsyncpa [#allocation3], 0
    %13 = vsyncpa [#allocation6], 0
    %14 = vsyncpa [#allocation4], 0
    %15 = vsyncpa [#allocation10], 0
    // Predicated region
    $region2: #{tpu_custom_call.1} parent=1 // pred_check
      _
    $region3: #{tpu_custom_call.1} parent=1 // pred_check_branch
      %17 = sbr.rel (0) target = $region5
    $region4: #{tpu_custom_call.1} parent=1 // pred_region
      %s19 = ssub.s32 128, 128
      %20 = vsyncadd [#allocation3], %s19
      %s22 = sshll.u32 [#allocation2], 4
      %s23 = int_to_ptr.vmem [resolvable:$true] %s22
      %25 = dma.hbm_to_vmem [thread:$0]  %s0, 128, %s23, [#allocation3]
    $region5: #{tpu_custom_call.1} parent=1 // pred_fallthru
      _
    // Predicated region
    $region6: #{tpu_custom_call.1} parent=1 // pred_check
      _
    $region7: #{tpu_custom_call.1} parent=1 // pred_check_branch
      %27 = sbr.rel (0) target = $region9
    $region8: #{tpu_custom_call.1} parent=1 // pred_region
      %s29 = ssub.s32 128, 128
      %30 = vsyncadd [#allocation6], %s29
      %s32 = sshll.u32 [#allocation5], 4
      %s33 = int_to_ptr.vmem [resolvable:$true] %s32
      %35 = dma.hbm_to_vmem [thread:$0]  %s1, 128, %s33, [#allocation6]
    $region9: #{tpu_custom_call.1} parent=1 // pred_fallthru
      _
    // Predicated region
    $region10: #{tpu_custom_call.1} parent=1 // pred_check
      _
    $region11: #{tpu_custom_call.1} parent=1 // pred_check_branch
      %37 = sbr.rel (0) target = $region13
    $region12: #{tpu_custom_call.1} parent=1 // pred_region
      %s39 = ssub.s32 1024, 1024
      %40 = vsyncadd [#allocation6], %s39
      %s41 = sshll.u32 [#allocation7], 4
      %s42 = int_to_ptr.vmem [resolvable:$true] %s41
      %47 = dma.hbm_to_vmem [thread:$0]  %s2, 1024, %s42, [#allocation6], 512, 512, 32
    $region13: #{tpu_custom_call.1} parent=1 // pred_fallthru
      _
    // Predicated region
    $region14: #{tpu_custom_call.1} parent=1 // pred_check
      _
    $region15: #{tpu_custom_call.1} parent=1 // pred_check_branch
      %49 = sbr.rel (0) target = $region17
    $region16: #{tpu_custom_call.1} parent=1 // pred_region
      _
    $region17: #{tpu_custom_call.1} parent=1 // pred_fallthru
      _
    // Predicated region
    $region18: #{tpu_custom_call.1} parent=1 // pred_check
      _
    $region19: #{tpu_custom_call.1} parent=1 // pred_check_branch
      %51 = sbr.rel (0) target = $region21
    $region20: #{tpu_custom_call.1} parent=1 // pred_region
      _
    $region21: #{tpu_custom_call.1} parent=1 // pred_fallthru
      _
    // Predicated region
    $region22: #{tpu_custom_call.1} parent=1 // pred_check
      _
    $region23: #{tpu_custom_call.1} parent=1 // pred_check_branch
      %53 = sbr.rel (0) target = $region25
    $region24: #{tpu_custom_call.1} parent=1 // pred_region
      %54 = dma.done [#allocation3], 128
    $region25: #{tpu_custom_call.1} parent=1 // pred_fallthru
      _
    // Predicated region
    $region26: #{tpu_custom_call.1} parent=1 // pred_check
      _
    $region27: #{tpu_custom_call.1} parent=1 // pred_check_branch
      %56 = sbr.rel (0) target = $region29
    $region28: #{tpu_custom_call.1} parent=1 // pred_region
      %57 = dma.done [#allocation6], 128
    $region29: #{tpu_custom_call.1} parent=1 // pred_fallthru
      _
    // Predicated region
    $region30: #{tpu_custom_call.1} parent=1 // pred_check
      _
    $region31: #{tpu_custom_call.1} parent=1 // pred_check_branch
      %59 = sbr.rel (0) target = $region33
    $region32: #{tpu_custom_call.1} parent=1 // pred_region
      %60 = dma.done [#allocation6], 1024
    $region33: #{tpu_custom_call.1} parent=1 // pred_fallthru
      _
    %v62 = vld [vmem:[#allocation2] sm:$0xff]
    %v63 = vunpack.c.l.bf16 %v62
    %v64 = vunpack.c.h.bf16 %v62
    %v65 = vld [vmem:[#allocation5] sm:$0xff]
    %v66 = vunpack.c.l.bf16 %v65
    %v67 = vunpack.c.h.bf16 %v65
    %v68 = vld [vmem:[#allocation7] sm:$0xff]
    %v69 = vld [vmem:[#allocation7 + $0x8] sm:$0xff]
    %v70 = vld [vmem:[#allocation7 + $0x10] sm:$0xff]
    %v71 = vld [vmem:[#allocation7 + $0x18] sm:$0xff]
    %v72 = vld [vmem:[#allocation7 + $0x20] sm:$0xff]
    %v73 = vld [vmem:[#allocation7 + $0x28] sm:$0xff]
    %v74 = vld [vmem:[#allocation7 + $0x30] sm:$0xff]
    %v75 = vld [vmem:[#allocation7 + $0x38] sm:$0xff]
    %v76 = vld [vmem:[%s3] sm:$0x1]
    %v79 = vcombine.high %v63, %v63
    %v81 = vunpack.c.l.s4 1983009808
    %v82 = vunpack.c.0.s8 %v81
    %v83 = vlaneseq
    %v84 = vshrl.u32 %v83, 7
    %v85 = vsub.s32 %v82, %v84
    %v86 = vrot.slane %v63, %v85
    %v88 = vunpack.c.l.s4 1983009808
    %v89 = vunpack.c.0.s8 %v88
    %v90 = vlaneseq
    %v91 = vshrl.u32 %v90, 7
    %v92 = vsub.s32 %v89, %v91
    %v93 = vrot.slane %v79, %v92
    %v94 = vcombine.high %v86, %v86
    %v95 = vcombine.high %v93, %v93
    %v96 = vcombine.high %v64, %v64
    %v98 = vunpack.c.l.s4 1983009808
    %v99 = vunpack.c.0.s8 %v98
    %v100 = vlaneseq
    %v101 = vshrl.u32 %v100, 7
    %v102 = vsub.s32 %v99, %v101
    %v103 = vrot.slane %v64, %v102
    %v105 = vunpack.c.l.s4 1983009808
    %v106 = vunpack.c.0.s8 %v105
    %v107 = vlaneseq
    %v108 = vshrl.u32 %v107, 7
    %v109 = vsub.s32 %v106, %v108
    %v110 = vrot.slane %v96, %v109
    %v111 = vcombine.high %v103, %v103
    %v112 = vcombine.high %v110, %v110
    %vm121 = vcmask 1041408
    %v122 = vsel %vm121, %v86, -inf
    %v123 = vsel %vm121, %v94, -inf
    %v124 = vsel %vm121, %v93, -inf
    %v125 = vsel %vm121, %v95, -inf
    %v126 = vsel %vm121, %v103, -inf
    %v127 = vmax.f32 %v122, %v126
    %v128 = vsel %vm121, %v111, -inf
    %v129 = vmax.f32 %v123, %v128
    %v130 = vsel %vm121, %v110, -inf
    %v131 = vmax.f32 %v124, %v130
    %v132 = vsel %vm121, %v112, -inf
    %v133 = vmax.f32 %v125, %v132
    %v134 = vmax.f32 %v127, %v129
    %v135 = vmax.f32 %v131, %v133
    %v136 = vmax.f32 %v134, %v135
    %137 = vmax.xlane.f32.xlu0 %v136
    %v138 = vpop.xlane.xlu0 %137
    %v139 = vsel %vm121, %v86, inf
    %v140 = vsel %vm121, %v94, inf
    %v141 = vsel %vm121, %v93, inf
    %v142 = vsel %vm121, %v95, inf
    %v143 = vsel %vm121, %v103, inf
    %v144 = vmin.f32 %v139, %v143
    %v145 = vsel %vm121, %v111, inf
    %v146 = vmin.f32 %v140, %v145
    %v147 = vsel %vm121, %v110, inf
    %v148 = vmin.f32 %v141, %v147
    %v149 = vsel %vm121, %v112, inf
    %v150 = vmin.f32 %v142, %v149
    %v151 = vmin.f32 %v144, %v146
    %v152 = vmin.f32 %v148, %v150
    %v153 = vmin.f32 %v151, %v152
    %154 = vmin.xlane.f32.xlu0 %v153
    %v155 = vpop.xlane.xlu0 %154
    %v156 = vsub.f32 %v138, %v155
    %v157 = vrcp.pop %v156
    %v158 = vmul.f32 1.0, %v157
    %v159 = vsub.f32 %v138, %v86
    %v160 = vsub.f32 %v138, %v94
    %v161 = vsub.f32 %v138, %v93
    %v162 = vsub.f32 %v138, %v95
    %v163 = vsub.f32 %v138, %v103
    %v164 = vsub.f32 %v138, %v111
    %v165 = vsub.f32 %v138, %v110
    %v166 = vsub.f32 %v138, %v112
    %v167 = vmul.f32 %v159, %v158
    %v168 = vmul.f32 %v160, %v158
    %v169 = vmul.f32 %v161, %v158
    %v170 = vmul.f32 %v162, %v158
    %v171 = vmul.f32 %v163, %v158
    %v172 = vmul.f32 %v164, %v158
    %v173 = vmul.f32 %v165, %v158
    %v174 = vmul.f32 %v166, %v158
    %v183 = vcombine.low %v167, %v168
    %v184 = vcombine.low %v169, %v170
    %v186 = vunpack.c.l.s4 1983009808
    %v187 = vunpack.c.0.s8 %v186
    %v188 = vlaneseq
    %v189 = vshrl.u32 %v188, 7
    %v190 = vsub.s32 %v187, %v189
    %v191 = vrot.slane %v183, %v190
    %v193 = vunpack.c.l.s4 1983009808
    %v194 = vunpack.c.0.s8 %v193
    %v195 = vlaneseq
    %v196 = vshrl.u32 %v195, 7
    %v197 = vsub.s32 %v194, %v196
    %v198 = vrot.slane %v184, %v197
    %v199 = vcombine.low %v191, %v198
    %v200 = vcombine.low %v171, %v172
    %v201 = vcombine.low %v173, %v174
    %v203 = vunpack.c.l.s4 1983009808
    %v204 = vunpack.c.0.s8 %v203
    %v205 = vlaneseq
    %v206 = vshrl.u32 %v205, 7
    %v207 = vsub.s32 %v204, %v206
    %v208 = vrot.slane %v200, %v207
    %v210 = vunpack.c.l.s4 1983009808
    %v211 = vunpack.c.0.s8 %v210
    %v212 = vlaneseq
    %v213 = vshrl.u32 %v212, 7
    %v214 = vsub.s32 %v211, %v213
    %v215 = vrot.slane %v201, %v214
    %v216 = vcombine.low %v208, %v215
    %v219 = vmul.f32 %v66, %v199
    %v220 = vmul.f32 %v67, %v216
    %v222 = vlaneseq
    %v223 = vshrl.u32 %v222, 7
    %v224 = vsub.s32 0, %v223
    %v225 = vrot.slane %v76, %v224
    %v228 = vcombine.high %v65, %v65
    %v230 = vunpack.c.l.s4 1966171168
    %v231 = vunpack.c.0.s8 %v230
    %v232 = vlaneseq
    %v233 = vshrl.u32 %v232, 7
    %v234 = vsub.s32 %v231, %v233
    %v235 = vrot.slane %v65, %v234
    %v237 = vunpack.c.l.s4 1966171168
    %v238 = vunpack.c.0.s8 %v237
    %v239 = vlaneseq
    %v240 = vshrl.u32 %v239, 7
    %v241 = vsub.s32 %v238, %v240
    %v242 = vrot.slane %v228, %v241
    %v243 = vcombine.high %v235, %v235
    %v244 = vcombine.high %v242, %v242
    %v246 = vunpack.c.l.s4 1966171168
    %v247 = vunpack.c.0.s8 %v246
    %v248 = vlaneseq
    %v249 = vshrl.u32 %v248, 7
    %v250 = vsub.s32 %v247, %v249
    %v251 = vrot.slane %v235, %v250
    %v253 = vunpack.c.l.s4 1966171168
    %v254 = vunpack.c.0.s8 %v253
    %v255 = vlaneseq
    %v256 = vshrl.u32 %v255, 7
    %v257 = vsub.s32 %v254, %v256
    %v258 = vrot.slane %v242, %v257
    %v260 = vunpack.c.l.s4 1966171168
    %v261 = vunpack.c.0.s8 %v260
    %v262 = vlaneseq
    %v263 = vshrl.u32 %v262, 7
    %v264 = vsub.s32 %v261, %v263
    %v265 = vrot.slane %v243, %v264
    %v267 = vunpack.c.l.s4 1966171168
    %v268 = vunpack.c.0.s8 %v267
    %v269 = vlaneseq
    %v270 = vshrl.u32 %v269, 7
    %v271 = vsub.s32 %v268, %v270
    %v272 = vrot.slane %v244, %v271
    %v273 = vcombine.high %v251, %v251
    %v274 = vcombine.high %v258, %v258
    %v275 = vcombine.high %v265, %v265
    %v276 = vcombine.high %v272, %v272
    %v293 = vunpack.c.l.b16 %v68
    %v294 = vunpack.c.h.b16 %v68
    %v295 = vunpack.c.l.b16 %v69
    %v296 = vunpack.c.h.b16 %v69
    %v297 = vunpack.c.l.b16 %v70
    %v298 = vunpack.c.h.b16 %v70
    %v299 = vunpack.c.l.b16 %v71
    %v300 = vunpack.c.h.b16 %v71
    %v301 = vunpack.c.l.b16 %v72
    %v302 = vunpack.c.h.b16 %v72
    %v303 = vunpack.c.l.b16 %v73
    %v304 = vunpack.c.h.b16 %v73
    %v305 = vunpack.c.l.b16 %v74
    %v306 = vunpack.c.h.b16 %v74
    %v307 = vunpack.c.l.b16 %v75
    %v308 = vunpack.c.h.b16 %v75
    %v309 = vpack.c.b16 %v301, %v293
    %v310 = vpack.c.b16 %v302, %v294
    %v311 = vpack.c.b16 %v303, %v295
    %v312 = vpack.c.b16 %v304, %v296
    %v313 = vpack.c.b16 %v305, %v297
    %v314 = vpack.c.b16 %v306, %v298
    %v315 = vpack.c.b16 %v307, %v299
    %v316 = vpack.c.b16 %v308, %v300
    %325 = vmatprep.subr.bf16.mxu0 %v310
    %326 = vmatpush1.bf16.xpose.msra.mxu0 %v309
    %327 = vmatprep.subr.bf16.mxu0 0
    %328 = vmatpush1.bf16.xpose.msra.mxu0 0
    %329 = vmatprep.subr.bf16.mxu0 0
    %330 = vmatpush1.bf16.xpose.msra.mxu0 0
    %331 = vmatprep.subr.bf16.mxu0 0
    %332 = vmatpush1.bf16.xpose.msra.mxu0 0
    %333 = vmatprep.subr.bf16.mxu0 0
    %334 = vmatpush1.bf16.xpose.msra.mxu0 0
    %335 = vmatprep.subr.bf16.mxu0 0
    %336 = vmatpush1.bf16.xpose.msra.mxu0 0
    %337 = vmatprep.subr.bf16.mxu0 0
    %338 = vmatpush1.bf16.xpose.msra.mxu0 0
    %339 = vmatprep.subr.bf16.mxu0 0
    %340 = vmatpush1.bf16.xpose.msra.mxu0 0
    %341 = vmatprep.subr.bf16.mxu0 0
    %342 = vmatpush1.bf16.xpose.msra.mxu0 0
    %343 = vmatprep.subr.bf16.mxu0 0
    %344 = vmatpush1.bf16.xpose.msra.mxu0 0
    %345 = vmatprep.subr.bf16.mxu0 0
    %346 = vmatpush1.bf16.xpose.msra.mxu0 0
    %347 = vmatprep.subr.bf16.mxu0 0
    %348 = vmatpush1.bf16.xpose.msra.mxu0 0
    %349 = vmatprep.subr.bf16.mxu0 0
    %350 = vmatpush1.bf16.xpose.msra.mxu0 0
    %351 = vmatprep.subr.bf16.mxu0 0
    %352 = vmatpush1.bf16.xpose.msra.mxu0 0
    %353 = vmatprep.subr.bf16.mxu0 0
    %354 = vmatpush1.bf16.xpose.msra.mxu0 0
    %355 = vmatprep.subr.bf16.mxu0 0
    %356 = vmatpush1.bf16.xpose.msra.mxu0 0
    %357 = vmatprep.mubr.bf16.mxu0 %v265
    %358 = vmatmul.mubr.bf16.gmra.mrb[0].mxu0 %v251
    %v359 = vpop.f32.mrb[0].mxu0
    %v360 = vadd.f32 %v225, %v359
    %v361 = vpop.f32.mrb[0].mxu0
    %v362 = vpop.f32.mrb[0].mxu0
    %v363 = vpop.f32.mrb[0].mxu0
    %364 = vdwg.mxu0
    %365 = vmatprep.subr.bf16.mxu0 %v312
    %366 = vmatpush1.bf16.xpose.msra.mxu0 %v311
    %367 = vmatprep.subr.bf16.mxu0 0
    %368 = vmatpush1.bf16.xpose.msra.mxu0 0
    %369 = vmatprep.subr.bf16.mxu0 0
    %370 = vmatpush1.bf16.xpose.msra.mxu0 0
    %371 = vmatprep.subr.bf16.mxu0 0
    %372 = vmatpush1.bf16.xpose.msra.mxu0 0
    %373 = vmatprep.subr.bf16.mxu0 0
    %374 = vmatpush1.bf16.xpose.msra.mxu0 0
    %375 = vmatprep.subr.bf16.mxu0 0
    %376 = vmatpush1.bf16.xpose.msra.mxu0 0
    %377 = vmatprep.subr.bf16.mxu0 0
    %378 = vmatpush1.bf16.xpose.msra.mxu0 0
    %379 = vmatprep.subr.bf16.mxu0 0
    %380 = vmatpush1.bf16.xpose.msra.mxu0 0
    %381 = vmatprep.subr.bf16.mxu0 0
    %382 = vmatpush1.bf16.xpose.msra.mxu0 0
    %383 = vmatprep.subr.bf16.mxu0 0
    %384 = vmatpush1.bf16.xpose.msra.mxu0 0
    %385 = vmatprep.subr.bf16.mxu0 0
    %386 = vmatpush1.bf16.xpose.msra.mxu0 0
    %387 = vmatprep.subr.bf16.mxu0 0
    %388 = vmatpush1.bf16.xpose.msra.mxu0 0
    %389 = vmatprep.subr.bf16.mxu0 0
    %390 = vmatpush1.bf16.xpose.msra.mxu0 0
    %391 = vmatprep.subr.bf16.mxu0 0
    %392 = vmatpush1.bf16.xpose.msra.mxu0 0
    %393 = vmatprep.subr.bf16.mxu0 0
    %394 = vmatpush1.bf16.xpose.msra.mxu0 0
    %395 = vmatprep.subr.bf16.mxu0 0
    %396 = vmatpush1.bf16.xpose.msra.mxu0 0
    %397 = vmatprep.mubr.bf16.mxu0 %v275
    %398 = vmatmul.mubr.bf16.gmra.mrb[0].mxu0 %v273
    %v399 = vpop.f32.mrb[0].mxu0
    %v400 = vadd.f32 %v360, %v399
    %v401 = vpop.f32.mrb[0].mxu0
    %v402 = vpop.f32.mrb[0].mxu0
    %v403 = vpop.f32.mrb[0].mxu0
    %404 = vdwg.mxu0
    %405 = vmatprep.subr.bf16.mxu0 %v314
    %406 = vmatpush1.bf16.xpose.msra.mxu0 %v313
    %407 = vmatprep.subr.bf16.mxu0 0
    %408 = vmatpush1.bf16.xpose.msra.mxu0 0
    %409 = vmatprep.subr.bf16.mxu0 0
    %410 = vmatpush1.bf16.xpose.msra.mxu0 0
    %411 = vmatprep.subr.bf16.mxu0 0
    %412 = vmatpush1.bf16.xpose.msra.mxu0 0
    %413 = vmatprep.subr.bf16.mxu0 0
    %414 = vmatpush1.bf16.xpose.msra.mxu0 0
    %415 = vmatprep.subr.bf16.mxu0 0
    %416 = vmatpush1.bf16.xpose.msra.mxu0 0
    %417 = vmatprep.subr.bf16.mxu0 0
    %418 = vmatpush1.bf16.xpose.msra.mxu0 0
    %419 = vmatprep.subr.bf16.mxu0 0
    %420 = vmatpush1.bf16.xpose.msra.mxu0 0
    %421 = vmatprep.subr.bf16.mxu0 0
    %422 = vmatpush1.bf16.xpose.msra.mxu0 0
    %423 = vmatprep.subr.bf16.mxu0 0
    %424 = vmatpush1.bf16.xpose.msra.mxu0 0
    %425 = vmatprep.subr.bf16.mxu0 0
    %426 = vmatpush1.bf16.xpose.msra.mxu0 0
    %427 = vmatprep.subr.bf16.mxu0 0
    %428 = vmatpush1.bf16.xpose.msra.mxu0 0
    %429 = vmatprep.subr.bf16.mxu0 0
    %430 = vmatpush1.bf16.xpose.msra.mxu0 0
    %431 = vmatprep.subr.bf16.mxu0 0
    %432 = vmatpush1.bf16.xpose.msra.mxu0 0
    %433 = vmatprep.subr.bf16.mxu0 0
    %434 = vmatpush1.bf16.xpose.msra.mxu0 0
    %435 = vmatprep.subr.bf16.mxu0 0
    %436 = vmatpush1.bf16.xpose.msra.mxu0 0
    %437 = vmatprep.mubr.bf16.mxu0 %v272
    %438 = vmatmul.mubr.bf16.gmra.mrb[0].mxu0 %v258
    %v439 = vpop.f32.mrb[0].mxu0
    %v440 = vadd.f32 %v400, %v439
    %v441 = vpop.f32.mrb[0].mxu0
    %v442 = vpop.f32.mrb[0].mxu0
    %v443 = vpop.f32.mrb[0].mxu0
    %444 = vdwg.mxu0
    %445 = vmatprep.subr.bf16.mxu0 %v316
    %446 = vmatpush1.bf16.xpose.msra.mxu0 %v315
    %447 = vmatprep.subr.bf16.mxu0 0
    %448 = vmatpush1.bf16.xpose.msra.mxu0 0
    %449 = vmatprep.subr.bf16.mxu0 0
    %450 = vmatpush1.bf16.xpose.msra.mxu0 0
    %451 = vmatprep.subr.bf16.mxu0 0
    %452 = vmatpush1.bf16.xpose.msra.mxu0 0
    %453 = vmatprep.subr.bf16.mxu0 0
    %454 = vmatpush1.bf16.xpose.msra.mxu0 0
    %455 = vmatprep.subr.bf16.mxu0 0
    %456 = vmatpush1.bf16.xpose.msra.mxu0 0
    %457 = vmatprep.subr.bf16.mxu0 0
    %458 = vmatpush1.bf16.xpose.msra.mxu0 0
    %459 = vmatprep.subr.bf16.mxu0 0
    %460 = vmatpush1.bf16.xpose.msra.mxu0 0
    %461 = vmatprep.subr.bf16.mxu0 0
    %462 = vmatpush1.bf16.xpose.msra.mxu0 0
    %463 = vmatprep.subr.bf16.mxu0 0
    %464 = vmatpush1.bf16.xpose.msra.mxu0 0
    %465 = vmatprep.subr.bf16.mxu0 0
    %466 = vmatpush1.bf16.xpose.msra.mxu0 0
    %467 = vmatprep.subr.bf16.mxu0 0
    %468 = vmatpush1.bf16.xpose.msra.mxu0 0
    %469 = vmatprep.subr.bf16.mxu0 0
    %470 = vmatpush1.bf16.xpose.msra.mxu0 0
    %471 = vmatprep.subr.bf16.mxu0 0
    %472 = vmatpush1.bf16.xpose.msra.mxu0 0
    %473 = vmatprep.subr.bf16.mxu0 0
    %474 = vmatpush1.bf16.xpose.msra.mxu0 0
    %475 = vmatprep.subr.bf16.mxu0 0
    %476 = vmatpush1.bf16.xpose.msra.mxu0 0
    %477 = vmatprep.mubr.bf16.mxu0 %v276
    %478 = vmatmul.mubr.bf16.gmra.mrb[0].mxu0 %v274
    %v479 = vpop.f32.mrb[0].mxu0
    %v480 = vadd.f32 %v440, %v479
    %v481 = vpop.f32.mrb[0].mxu0
    %v482 = vpop.f32.mrb[0].mxu0
    %v483 = vpop.f32.mrb[0].mxu0
    %484 = vdwg.mxu0
    %v487 = vcombine.high %v219, %v219
    %v489 = vunpack.c.l.s4 1983009808
    %v490 = vunpack.c.0.s8 %v489
    %v491 = vlaneseq
    %v492 = vshrl.u32 %v491, 7
    %v493 = vsub.s32 %v490, %v492
    %v494 = vrot.slane %v219, %v493
    %v496 = vunpack.c.l.s4 1983009808
    %v497 = vunpack.c.0.s8 %v496
    %v498 = vlaneseq
    %v499 = vshrl.u32 %v498, 7
    %v500 = vsub.s32 %v497, %v499
    %v501 = vrot.slane %v487, %v500
    %v502 = vcombine.high %v494, %v494
    %v503 = vcombine.high %v501, %v501
    %v504 = vcombine.high %v220, %v220
    %v506 = vunpack.c.l.s4 1983009808
    %v507 = vunpack.c.0.s8 %v506
    %v508 = vlaneseq
    %v509 = vshrl.u32 %v508, 7
    %v510 = vsub.s32 %v507, %v509
    %v511 = vrot.slane %v220, %v510
    %v513 = vunpack.c.l.s4 1983009808
    %v514 = vunpack.c.0.s8 %v513
    %v515 = vlaneseq
    %v516 = vshrl.u32 %v515, 7
    %v517 = vsub.s32 %v514, %v516
    %v518 = vrot.slane %v504, %v517
    %v519 = vcombine.high %v511, %v511
    %v520 = vcombine.high %v518, %v518
    %v529 = vpack.c.bf16 %v494, %v494
    %v530 = vpack.c.bf16 %v502, %v502
    %v531 = vpack.c.bf16 %v501, %v501
    %v532 = vpack.c.bf16 %v503, %v503
    %v533 = vpack.c.bf16 %v511, %v511
    %v534 = vpack.c.bf16 %v519, %v519
    %v535 = vpack.c.bf16 %v518, %v518
    %v536 = vpack.c.bf16 %v520, %v520
    %537 = vmatprep.subr.bf16.mxu0 %v310
    %538 = vmatpush1.bf16.xpose.msra.mxu0 %v309
    %539 = vmatprep.subr.bf16.mxu0 0
    %540 = vmatpush1.bf16.xpose.msra.mxu0 0
    %541 = vmatprep.subr.bf16.mxu0 0
    %542 = vmatpush1.bf16.xpose.msra.mxu0 0
    %543 = vmatprep.subr.bf16.mxu0 0
    %544 = vmatpush1.bf16.xpose.msra.mxu0 0
    %545 = vmatprep.subr.bf16.mxu0 0
    %546 = vmatpush1.bf16.xpose.msra.mxu0 0
    %547 = vmatprep.subr.bf16.mxu0 0
    %548 = vmatpush1.bf16.xpose.msra.mxu0 0
    %549 = vmatprep.subr.bf16.mxu0 0
    %550 = vmatpush1.bf16.xpose.msra.mxu0 0
    %551 = vmatprep.subr.bf16.mxu0 0
    %552 = vmatpush1.bf16.xpose.msra.mxu0 0
    %553 = vmatprep.subr.bf16.mxu0 0
    %554 = vmatpush1.bf16.xpose.msra.mxu0 0
    %555 = vmatprep.subr.bf16.mxu0 0
    %556 = vmatpush1.bf16.xpose.msra.mxu0 0
    %557 = vmatprep.subr.bf16.mxu0 0
    %558 = vmatpush1.bf16.xpose.msra.mxu0 0
    %559 = vmatprep.subr.bf16.mxu0 0
    %560 = vmatpush1.bf16.xpose.msra.mxu0 0
    %561 = vmatprep.subr.bf16.mxu0 0
    %562 = vmatpush1.bf16.xpose.msra.mxu0 0
    %563 = vmatprep.subr.bf16.mxu0 0
    %564 = vmatpush1.bf16.xpose.msra.mxu0 0
    %565 = vmatprep.subr.bf16.mxu0 0
    %566 = vmatpush1.bf16.xpose.msra.mxu0 0
    %567 = vmatprep.subr.bf16.mxu0 0
    %568 = vmatpush1.bf16.xpose.msra.mxu0 0
    %569 = vmatprep.mubr.bf16.mxu0 %v530
    %570 = vmatmul.mubr.bf16.gmra.mrb[0].mxu0 %v529
    %v571 = vpop.f32.mrb[0].mxu0
    %v572 = vadd.f32 %v225, %v571
    %v573 = vpop.f32.mrb[0].mxu0
    %v574 = vpop.f32.mrb[0].mxu0
    %v575 = vpop.f32.mrb[0].mxu0
    %576 = vdwg.mxu0
    %577 = vmatprep.subr.bf16.mxu0 %v312
    %578 = vmatpush1.bf16.xpose.msra.mxu0 %v311
    %579 = vmatprep.subr.bf16.mxu0 0
    %580 = vmatpush1.bf16.xpose.msra.mxu0 0
    %581 = vmatprep.subr.bf16.mxu0 0
    %582 = vmatpush1.bf16.xpose.msra.mxu0 0
    %583 = vmatprep.subr.bf16.mxu0 0
    %584 = vmatpush1.bf16.xpose.msra.mxu0 0
    %585 = vmatprep.subr.bf16.mxu0 0
    %586 = vmatpush1.bf16.xpose.msra.mxu0 0
    %587 = vmatprep.subr.bf16.mxu0 0
    %588 = vmatpush1.bf16.xpose.msra.mxu0 0
    %589 = vmatprep.subr.bf16.mxu0 0
    %590 = vmatpush1.bf16.xpose.msra.mxu0 0
    %591 = vmatprep.subr.bf16.mxu0 0
    %592 = vmatpush1.bf16.xpose.msra.mxu0 0
    %593 = vmatprep.subr.bf16.mxu0 0
    %594 = vmatpush1.bf16.xpose.msra.mxu0 0
    %595 = vmatprep.subr.bf16.mxu0 0
    %596 = vmatpush1.bf16.xpose.msra.mxu0 0
    %597 = vmatprep.subr.bf16.mxu0 0
    %598 = vmatpush1.bf16.xpose.msra.mxu0 0
    %599 = vmatprep.subr.bf16.mxu0 0
    %600 = vmatpush1.bf16.xpose.msra.mxu0 0
    %601 = vmatprep.subr.bf16.mxu0 0
    %602 = vmatpush1.bf16.xpose.msra.mxu0 0
    %603 = vmatprep.subr.bf16.mxu0 0
    %604 = vmatpush1.bf16.xpose.msra.mxu0 0
    %605 = vmatprep.subr.bf16.mxu0 0
    %606 = vmatpush1.bf16.xpose.msra.mxu0 0
    %607 = vmatprep.subr.bf16.mxu0 0
    %608 = vmatpush1.bf16.xpose.msra.mxu0 0
    %609 = vmatprep.mubr.bf16.mxu0 %v532
    %610 = vmatmul.mubr.bf16.gmra.mrb[0].mxu0 %v531
    %v611 = vpop.f32.mrb[0].mxu0
    %v612 = vadd.f32 %v572, %v611
    %v613 = vpop.f32.mrb[0].mxu0
    %v614 = vpop.f32.mrb[0].mxu0
    %v615 = vpop.f32.mrb[0].mxu0
    %616 = vdwg.mxu0
    %617 = vmatprep.subr.bf16.mxu0 %v314
    %618 = vmatpush1.bf16.xpose.msra.mxu0 %v313
    %619 = vmatprep.subr.bf16.mxu0 0
    %620 = vmatpush1.bf16.xpose.msra.mxu0 0
    %621 = vmatprep.subr.bf16.mxu0 0
    %622 = vmatpush1.bf16.xpose.msra.mxu0 0
    %623 = vmatprep.subr.bf16.mxu0 0
    %624 = vmatpush1.bf16.xpose.msra.mxu0 0
    %625 = vmatprep.subr.bf16.mxu0 0
    %626 = vmatpush1.bf16.xpose.msra.mxu0 0
    %627 = vmatprep.subr.bf16.mxu0 0
    %628 = vmatpush1.bf16.xpose.msra.mxu0 0
    %629 = vmatprep.subr.bf16.mxu0 0
    %630 = vmatpush1.bf16.xpose.msra.mxu0 0
    %631 = vmatprep.subr.bf16.mxu0 0
    %632 = vmatpush1.bf16.xpose.msra.mxu0 0
    %633 = vmatprep.subr.bf16.mxu0 0
    %634 = vmatpush1.bf16.xpose.msra.mxu0 0
    %635 = vmatprep.subr.bf16.mxu0 0
    %636 = vmatpush1.bf16.xpose.msra.mxu0 0
    %637 = vmatprep.subr.bf16.mxu0 0
    %638 = vmatpush1.bf16.xpose.msra.mxu0 0
    %639 = vmatprep.subr.bf16.mxu0 0
    %640 = vmatpush1.bf16.xpose.msra.mxu0 0
    %641 = vmatprep.subr.bf16.mxu0 0
    %642 = vmatpush1.bf16.xpose.msra.mxu0 0
    %643 = vmatprep.subr.bf16.mxu0 0
    %644 = vmatpush1.bf16.xpose.msra.mxu0 0
    %645 = vmatprep.subr.bf16.mxu0 0
    %646 = vmatpush1.bf16.xpose.msra.mxu0 0
    %647 = vmatprep.subr.bf16.mxu0 0
    %648 = vmatpush1.bf16.xpose.msra.mxu0 0
    %649 = vmatprep.mubr.bf16.mxu0 %v534
    %650 = vmatmul.mubr.bf16.gmra.mrb[0].mxu0 %v533
    %v651 = vpop.f32.mrb[0].mxu0
    %v652 = vadd.f32 %v612, %v651
    %v653 = vpop.f32.mrb[0].mxu0
    %v654 = vpop.f32.mrb[0].mxu0
    %v655 = vpop.f32.mrb[0].mxu0
    %656 = vdwg.mxu0
    %657 = vmatprep.subr.bf16.mxu0 %v316
    %658 = vmatpush1.bf16.xpose.msra.mxu0 %v315
    %659 = vmatprep.subr.bf16.mxu0 0
    %660 = vmatpush1.bf16.xpose.msra.mxu0 0
    %661 = vmatprep.subr.bf16.mxu0 0
    %662 = vmatpush1.bf16.xpose.msra.mxu0 0
    %663 = vmatprep.subr.bf16.mxu0 0
    %664 = vmatpush1.bf16.xpose.msra.mxu0 0
    %665 = vmatprep.subr.bf16.mxu0 0
    %666 = vmatpush1.bf16.xpose.msra.mxu0 0
    %667 = vmatprep.subr.bf16.mxu0 0
    %668 = vmatpush1.bf16.xpose.msra.mxu0 0
    %669 = vmatprep.subr.bf16.mxu0 0
    %670 = vmatpush1.bf16.xpose.msra.mxu0 0
    %671 = vmatprep.subr.bf16.mxu0 0
    %672 = vmatpush1.bf16.xpose.msra.mxu0 0
    %673 = vmatprep.subr.bf16.mxu0 0
    %674 = vmatpush1.bf16.xpose.msra.mxu0 0
    %675 = vmatprep.subr.bf16.mxu0 0
    %676 = vmatpush1.bf16.xpose.msra.mxu0 0
    %677 = vmatprep.subr.bf16.mxu0 0
    %678 = vmatpush1.bf16.xpose.msra.mxu0 0
    %679 = vmatprep.subr.bf16.mxu0 0
    %680 = vmatpush1.bf16.xpose.msra.mxu0 0
    %681 = vmatprep.subr.bf16.mxu0 0
    %682 = vmatpush1.bf16.xpose.msra.mxu0 0
    %683 = vmatprep.subr.bf16.mxu0 0
    %684 = vmatpush1.bf16.xpose.msra.mxu0 0
    %685 = vmatprep.subr.bf16.mxu0 0
    %686 = vmatpush1.bf16.xpose.msra.mxu0 0
    %687 = vmatprep.subr.bf16.mxu0 0
    %688 = vmatpush1.bf16.xpose.msra.mxu0 0
    %689 = vmatprep.mubr.bf16.mxu0 %v536
    %690 = vmatmul.mubr.bf16.gmra.mrb[0].mxu0 %v535
    %v691 = vpop.f32.mrb[0].mxu0
    %v692 = vadd.f32 %v652, %v691
    %v693 = vpop.f32.mrb[0].mxu0
    %v694 = vpop.f32.mrb[0].mxu0
    %v695 = vpop.f32.mrb[0].mxu0
    %696 = vdwg.mxu0
    %v697 = vmul.f32 %v480, %v692
    %vm698 = vcmask 123904
    %v699 = vsel %vm698, %v697, 0.0
    %700 = vadd.xlane.f32.xlu0 %v699
    %v701 = vpop.xlane.xlu0 %700
    %v702 = vmul.f32 %v480, %v480
    %v703 = vsel %vm698, %v702, 0.0
    %704 = vadd.xlane.f32.xlu0 %v703
    %v705 = vpop.xlane.xlu0 %704
    %v706 = vmul.f32 %v692, %v692
    %v707 = vsel %vm698, %v706, 0.0
    %708 = vadd.xlane.f32.xlu0 %v707
    %v709 = vpop.xlane.xlu0 %708
    %v710 = vmul.f32 %v705, %v709
    %v711 = vmax.f32 %v710, 1e-16
    %v712 = vrsqrt.pop %v711
    %v713 = vmul.f32 %v701, %v712
    %v714 = vand.u32 2147483647, %v713
    %v715 = vsel %vm121, %v714, 0.0
    %v716 = vrot.slane %v715, 4
    %v717 = vadd.f32 %v715, %v716
    %v718 = vrot.slane %v717, 2
    %v719 = vadd.f32 %v717, %v718
    %v720 = vrot.slane %v719, 1
    %v721 = vadd.f32 %v719, %v720
    %v722 = vmul.f32 %v721, 0.5
    %v723 = vsub.f32 %v722, 0.1
    %v724 = vmax.f32 %v723, 0.0
    %v725 = vsel %vm698, %v480, -inf
    %726 = vmax.xlane.f32.xlu0 %v725
    %v727 = vpop.xlane.xlu0 %726
    %v728 = vsub.f32 %v480, %v727
    %v729 = vmul.f32 %v728, 1.442695
    %v730 = vpow.pop %v729
    %v731 = vsel %vm698, %v730, 0.0
    %732 = vadd.xlane.f32.xlu0 %v731
    %v733 = vpop.xlane.xlu0 %732
    %v734 = vlog2.pop %v733
    %v735 = vmul.f32 %v734, 0.6931472
    %v736 = vadd.f32 %v735, %v727
    %v737 = vsub.f32 %v480, %v736
    %v738 = vlaneseq
    %v739 = vand.u32 %v738, 127
    %v740 = vld [vmem:[%s4] sm:$0x3]
    %741 = vset.pattern.permute.xlu0 0
    %742 = vperm.xlu0 %741, %v740
    %v743 = vpop.permute.xlu0 %742
    %vm744 = vcmp.eq.s32.totalorder %v739, %v743
    %v745 = vsel %vm744, %v737, 0.0
    %v746 = vsel %vm698, %v745, 0.0
    %747 = vadd.xlane.f32.xlu0 %v746
    %v748 = vpop.xlane.xlu0 %747
    %v749 = vsel %vm121, %v748, 0.0
    %v750 = vrot.slane %v749, 4
    %v751 = vadd.f32 %v749, %v750
    %v752 = vrot.slane %v751, 2
    %v753 = vadd.f32 %v751, %v752
    %v754 = vrot.slane %v753, 1
    %v755 = vadd.f32 %v753, %v754
    %v756 = vsub.f32 0.0, %v755
    %v757 = vmul.f32 %v756, 0.5
    %v758 = vadd.f32 %v757, %v724
    %vm759 = vcmask 0
    %760 = vst.msk [vmem:[#allocation8] sm:$0x1] %vm759, %v758
    %761 = vst.msk [vmem:[#allocation9] sm:$0x1] %vm759, %v724
    // Predicated region
    $region34: #{tpu_custom_call.1} parent=1 // pred_check
      _
    $region35: #{tpu_custom_call.1} parent=1 // pred_check_branch
      %763 = sbr.rel (0) target = $region37
    $region36: #{tpu_custom_call.1} parent=1 // pred_region
      %s765 = ssub.s32 16, 16
      %766 = vsyncadd [#allocation4], %s765
      %s768 = sshll.u32 [#allocation8], 4
      %s769 = int_to_ptr.vmem [resolvable:$true] %s768
      %771 = dma.vmem_to_hbm [thread:$0]  %s769, 16, %s5, [#allocation4]
    $region37: #{tpu_custom_call.1} parent=1 // pred_fallthru
      _
    // Predicated region
    $region38: #{tpu_custom_call.1} parent=1 // pred_check
      _
    $region39: #{tpu_custom_call.1} parent=1 // pred_check_branch
      %773 = sbr.rel (0) target = $region41
    $region40: #{tpu_custom_call.1} parent=1 // pred_region
      %s775 = ssub.s32 16, 16
      %776 = vsyncadd [#allocation10], %s775
      %s778 = sshll.u32 [#allocation9], 4
      %s779 = int_to_ptr.vmem [resolvable:$true] %s778
      %781 = dma.vmem_to_hbm [thread:$0]  %s779, 16, %s6, [#allocation10]
    $region41: #{tpu_custom_call.1} parent=1 // pred_fallthru
      _
    // Predicated region
    $region42: #{tpu_custom_call.1} parent=1 // pred_check
      _
    $region43: #{tpu_custom_call.1} parent=1 // pred_check_branch
      %783 = sbr.rel (0) target = $region45
    $region44: #{tpu_custom_call.1} parent=1 // pred_region
      %784 = dma.done [#allocation4], 16
    $region45: #{tpu_custom_call.1} parent=1 // pred_fallthru
      _
    // Predicated region
    $region46: #{tpu_custom_call.1} parent=1 // pred_check
      _
    $region47: #{tpu_custom_call.1} parent=1 // pred_check_branch
      %786 = sbr.rel (0) target = $region49
    $region48: #{tpu_custom_call.1} parent=1 // pred_region
      %787 = dma.done [#allocation10], 16
    $region49: #{tpu_custom_call.1} parent=1 // pred_fallthru
      _
    %788 = vsyncpa [#allocation3], 1
    %789 = vsyncpa [#allocation6], 1
    %790 = vsyncpa [#allocation4], 1
    %791 = vsyncpa [#allocation10], 1

</llo_original>
